<compile_context>
chip_gen: v5e
topology: v5e:2x2
jax: 0.10.0
libtpu: 0.0.40
codegen_flags: <defaults>
</compile_context>

<pallas_src>
import functools
import math

import jax
import jax.numpy as jnp
from jax import lax
from jax.experimental import pallas as pl
from jax.experimental.pallas import tpu as pltpu

_EPS = 1e-32                        # matches the PyTorch module's epsilon
_LOG_EPS_CLAMP = -math.log(_EPS)    # log(sigmoid + eps) >= log(eps) = -73.68...
_MAX_TILE_ELEMS = 4096 * 128        # ~2 MiB f32 per input buffer per pipeline slot


def _plan_tiles(rows, lanes):
    """(tile_rows, n_tiles): tile_rows is the full extent or a multiple of 8."""
    max_rows = max(8, (_MAX_TILE_ELEMS // max(lanes, 1)) // 8 * 8)
    if rows <= max_rows:
        return rows, 1
    return max_rows, -(-rows // max_rows)


def _cwce_partial_kernel(out_ref, lab_ref, a_ref, b_ref, c_ref, d_ref, *,
                         tile_rows, lanes, rows_total, tiles_per_par,
                         needs_mask):
    t = pl.program_id(2)

    @pl.when(t == 0)
    def _init():
        a_ref[...] = jnp.zeros_like(a_ref)
        b_ref[...] = jnp.zeros_like(b_ref)
        c_ref[...] = jnp.zeros_like(c_ref)
        d_ref[...] = jnp.zeros_like(d_ref)

    x = out_ref[...].astype(jnp.float32)      # (tile_rows, lanes) logits, channel 0
    y = lab_ref[...].astype(jnp.float32)      # (tile_rows, lanes) labels

    if needs_mask:
        # Last (boundary) tile over-reads past `rows_total`; zero x/y *before*
        # any transcendental so stale VMEM (possibly NaN) never propagates.
        lt = pl.program_id(1) * tiles_per_par + t
        row = lax.broadcasted_iota(jnp.int32, (tile_rows, lanes), 0)
        valid = (lt * tile_rows + row) < rows_total
        x = jnp.where(valid, x, 0.0)
        y = jnp.where(valid, y, 0.0)

    # softplus(-x) = max(-x, 0) + log(1 + exp(-|x|))  -> 1 exp + 1 log (EUP)
    sp = jnp.maximum(-x, 0.0) + jnp.log(1.0 + jnp.exp(-jnp.abs(x)))
    spx = sp + x
    # eps-clamp: log(sigmoid(x)+eps) ~= -min(sp, K); log(1-sigmoid(x)+eps) ~= -min(spx, K)
    sp_c = jnp.minimum(sp, _LOG_EPS_CLAMP)
    spx_c = jnp.minimum(spx, _LOG_EPS_CLAMP)
    if needs_mask:
        spx_c = jnp.where(valid, spx_c, 0.0)   # y is already masked for the others

    def fold_add(ref, v):
        """Accumulate (tile_rows, lanes) -> (<=8, lanes) resident accumulator."""
        if tile_rows <= 8:
            ref[...] += v
            return
        g8 = (tile_rows // 8) * 8
        ref[...] += v[:g8].reshape(-1, 8, lanes).sum(axis=0)
        rem = tile_rows - g8
        if rem:
            ref[0:rem, :] += v[g8:, :]

    fold_add(a_ref, spx_c)        # A = sum(min(softplus(x), K))
    fold_add(b_ref, y * sp_c)     # B = sum(y * min(softplus(-x), K))
    fold_add(c_ref, y * spx_c)    # C = sum(y * min(softplus(x), K))
    fold_add(d_ref, y)            # D = num_pos


def cwce_loss(output, labels):
    """Pallas implementation of CWCELoss.forward. Returns (fpcls, fpcls)."""
    B = output.shape[0]
    C = output.shape[1] if output.ndim > 1 else 1
    spatial = output.shape[2:]
    hw = 1
    for s in spatial:
        hw *= int(s)
    numel = int(labels.size)
    assert numel == B * hw, "labels must match output[:, :1] element count"

    # Free (contiguous) reshape of the channel plane into (rows, lanes).
    if hw % 128 == 0:
        lanes, rows = 128, hw // 128
    else:
        lanes = int(spatial[-1]) if spatial else 1
        rows = hw // lanes
    out_r = output.reshape(B, C, rows, lanes)
    lab_r = labels.reshape(B, 1, rows, lanes)

    tile_rows, n_tiles = _plan_tiles(rows, lanes)
    needs_mask = (tile_rows * n_tiles != rows)
    # Second "parallel" axis: use both v7x TensorCores when the batch axis
    # alone can't (odd / unit batch).  No-op on v5e/v6e (single TC).
    n_par = 2 if (B % 2 == 1 and n_tiles >= 2 and n_tiles % 2 == 0) else 1
    nh = n_tiles // n_par
    acc_rows = min(8, tile_rows)

    kernel = functools.partial(
        _cwce_partial_kernel, tile_rows=tile_rows, lanes=lanes,
        rows_total=rows, tiles_per_par=nh, needs_mask=needs_mask)

    part_shape = jax.ShapeDtypeStruct((B, n_par, acc_rows, lanes), jnp.float32)
    in_map = lambda b, h, t: (b, 0, h * nh + t, 0)     # channel block pinned to 0
    out_map = lambda b, h, t: (b, h, 0, 0)             # same block across t => accumulator
    in_spec = pl.BlockSpec((None, None, tile_rows, lanes), in_map)
    out_spec = pl.BlockSpec((None, None, acc_rows, lanes), out_map)

    elems = B * n_tiles * tile_rows * lanes
    cost = pl.CostEstimate(
        flops=14 * elems,
        transcendentals=2 * elems,
        bytes_accessed=B * rows * lanes * (out_r.dtype.itemsize + lab_r.dtype.itemsize)
        + 4 * B * n_par * acc_rows * lanes * 4,
    )

    a_p, b_p, c_p, d_p = pl.pallas_call(
        kernel,
        out_shape=(part_shape,) * 4,
        grid=(B, n_par, nh),
        in_specs=[in_spec, in_spec],
        out_specs=(out_spec,) * 4,
        compiler_params=pltpu.CompilerParams(
            dimension_semantics=("parallel", "parallel", "arbitrary"),
            vmem_limit_bytes=32 * 1024 * 1024),
        cost_estimate=cost,
    )(out_r, lab_r)

    # Tiny epilogue: cross-lane reduces of the vreg-sized partials + class balance.
    numel_f = jnp.float32(numel)
    a_sum = jnp.sum(a_p)
    b_sum = jnp.sum(b_p)
    c_sum = jnp.sum(c_p)
    num_pos = jnp.sum(d_p)
    beta_p = num_pos / numel_f
    beta_n = (numel_f - num_pos) / numel_f
    pos_sum = -b_sum                # sum(y * log(sigmoid + eps))
    neg_sum = c_sum - a_sum         # sum((1-y) * log(1 - sigmoid + eps))
    fpcls = -(beta_n * pos_sum + beta_p * neg_sum) / numel_f
    return fpcls, fpcls


def _cwce_ref(output, labels):
    """Pure-JAX reference mirroring the PyTorch forward (eps-clamped logs)."""
    outs = jax.nn.sigmoid(output[:, :1]).astype(jnp.float32)
    labels = labels.astype(jnp.float32)
    neg_labels = 1.0 - labels
    neg_outs = 1.0 - outs
    num_neg = neg_labels.sum()
    num_pos = labels.sum()
    beta_p = num_pos / (num_pos + num_neg)
    beta_n = num_neg / (num_pos + num_neg)
    pos_loss = labels * jnp.log(outs + _EPS)
    neg_loss = neg_labels * jnp.log(neg_outs + _EPS)
    fpcls = -beta_n * pos_loss.mean() - beta_p * neg_loss.mean()
    return fpcls, fpcls


if __name__ == "__main__":
    key = jax.random.PRNGKey(0)
    k1, k2 = jax.random.split(key)

    B, C, H, W = 2, 4, 16, 16
    output = jax.random.normal(k1, (B, C, H, W), dtype=jnp.float32)
    labels = jax.random.bernoulli(k2, p=0.3, shape=(B, 1, H, W)).astype(jnp.float32)

    loss_fn = jax.jit(cwce_loss)
    fpcls, fpcls2 = loss_fn(output, labels)
    jax.block_until_ready(fpcls)

    ref, _ = _cwce_ref(output, labels)
    assert jnp.allclose(fpcls, ref, rtol=1e-4, atol=1e-5), (fpcls, ref)

    print("KERNEL_OK")
</pallas_src>

<mosaic_0001>
module attributes {stable_mosaic.version = 11 : i64} {
  func.func @_cwce_partial_kernel(%arg0: i32, %arg1: i32, %arg2: i32, %arg3: memref<1x1x2x128xf32, #tpu.memory_space<vmem>>, %arg4: memref<1x1x2x128xf32, #tpu.memory_space<vmem>>, %arg5: memref<1x1x2x128xf32, #tpu.memory_space<vmem>>, %arg6: memref<1x1x2x128xf32, #tpu.memory_space<vmem>>, %arg7: memref<1x1x2x128xf32, #tpu.memory_space<vmem>>, %arg8: memref<1x1x2x128xf32, #tpu.memory_space<vmem>>) attributes {dimension_semantics = [#tpu.dimension_semantics<parallel>, #tpu.dimension_semantics<parallel>, #tpu.dimension_semantics<arbitrary>], iteration_bounds = array<i64: 2, 1, 1>, scalar_prefetch = 0 : i64, scratch_operands = 0 : i64, tpu.core_type = #tpu.core_type<tc>, window_params = [{transform_indices = @transform_0, window_bounds = array<i64: 1, 1, 2, 128>}, {transform_indices = @transform_1, window_bounds = array<i64: 1, 1, 2, 128>}, {transform_indices = @transform_2, window_bounds = array<i64: 1, 1, 2, 128>}, {transform_indices = @transform_3, window_bounds = array<i64: 1, 1, 2, 128>}, {transform_indices = @transform_4, window_bounds = array<i64: 1, 1, 2, 128>}, {transform_indices = @transform_5, window_bounds = array<i64: 1, 1, 2, 128>}]} {
    %c0_i32 = arith.constant 0 : i32
    %0 = arith.cmpi eq, %arg2, %c0_i32 : i32
    %1 = arith.extui %0 : i1 to i32
    %c0_i32_0 = arith.constant 0 : i32
    %2 = arith.cmpi ne, %1, %c0_i32_0 : i32
    scf.if %2 {
      %cst_45 = arith.constant 0.000000e+00 : f32
      %50 = vector.broadcast %cst_45 : f32 to vector<2x128xf32>
      %c0_46 = arith.constant 0 : index
      %c0_47 = arith.constant 0 : index
      %c0_48 = arith.constant 0 : index
      %c0_49 = arith.constant 0 : index
      %51 = vector.load %arg5[%c0_46, %c0_47, %c0_48, %c0_49] : memref<1x1x2x128xf32, #tpu.memory_space<vmem>>, vector<1x1x2x128xf32>
      %52 = vector.shape_cast %51 : vector<1x1x2x128xf32> to vector<2x128xf32>
      %53 = vector.shape_cast %50 : vector<2x128xf32> to vector<1x1x2x128xf32>
      tpu.vector_store %arg5[%c0_46, %c0_47, %c0_48, %c0_49], %53 {strides = array<i32>} : memref<1x1x2x128xf32, #tpu.memory_space<vmem>>, vector<1x1x2x128xf32>,
      %cst_50 = arith.constant 0.000000e+00 : f32
      %54 = vector.broadcast %cst_50 : f32 to vector<2x128xf32>
      %c0_51 = arith.constant 0 : index
      %c0_52 = arith.constant 0 : index
      %c0_53 = arith.constant 0 : index
      %c0_54 = arith.constant 0 : index
      %55 = vector.load %arg6[%c0_51, %c0_52, %c0_53, %c0_54] : memref<1x1x2x128xf32, #tpu.memory_space<vmem>>, vector<1x1x2x128xf32>
      %56 = vector.shape_cast %55 : vector<1x1x2x128xf32> to vector<2x128xf32>
      %57 = vector.shape_cast %54 : vector<2x128xf32> to vector<1x1x2x128xf32>
      tpu.vector_store %arg6[%c0_51, %c0_52, %c0_53, %c0_54], %57 {strides = array<i32>} : memref<1x1x2x128xf32, #tpu.memory_space<vmem>>, vector<1x1x2x128xf32>,
      %cst_55 = arith.constant 0.000000e+00 : f32
      %58 = vector.broadcast %cst_55 : f32 to vector<2x128xf32>
      %c0_56 = arith.constant 0 : index
      %c0_57 = arith.constant 0 : index
      %c0_58 = arith.constant 0 : index
      %c0_59 = arith.constant 0 : index
      %59 = vector.load %arg7[%c0_56, %c0_57, %c0_58, %c0_59] : memref<1x1x2x128xf32, #tpu.memory_space<vmem>>, vector<1x1x2x128xf32>
      %60 = vector.shape_cast %59 : vector<1x1x2x128xf32> to vector<2x128xf32>
      %61 = vector.shape_cast %58 : vector<2x128xf32> to vector<1x1x2x128xf32>
      tpu.vector_store %arg7[%c0_56, %c0_57, %c0_58, %c0_59], %61 {strides = array<i32>} : memref<1x1x2x128xf32, #tpu.memory_space<vmem>>, vector<1x1x2x128xf32>,
      %cst_60 = arith.constant 0.000000e+00 : f32
      %62 = vector.broadcast %cst_60 : f32 to vector<2x128xf32>
      %c0_61 = arith.constant 0 : index
      %c0_62 = arith.constant 0 : index
      %c0_63 = arith.constant 0 : index
      %c0_64 = arith.constant 0 : index
      %63 = vector.load %arg8[%c0_61, %c0_62, %c0_63, %c0_64] : memref<1x1x2x128xf32, #tpu.memory_space<vmem>>, vector<1x1x2x128xf32>
      %64 = vector.shape_cast %63 : vector<1x1x2x128xf32> to vector<2x128xf32>
      %65 = vector.shape_cast %62 : vector<2x128xf32> to vector<1x1x2x128xf32>
      tpu.vector_store %arg8[%c0_61, %c0_62, %c0_63, %c0_64], %65 {strides = array<i32>} : memref<1x1x2x128xf32, #tpu.memory_space<vmem>>, vector<1x1x2x128xf32>,
    } else {
    }
    %c0 = arith.constant 0 : index
    %c0_1 = arith.constant 0 : index
    %c0_2 = arith.constant 0 : index
    %c0_3 = arith.constant 0 : index
    %3 = vector.load %arg3[%c0, %c0_1, %c0_2, %c0_3] : memref<1x1x2x128xf32, #tpu.memory_space<vmem>>, vector<1x1x2x128xf32>
    %4 = vector.shape_cast %3 : vector<1x1x2x128xf32> to vector<2x128xf32>
    %c0_4 = arith.constant 0 : index
    %c0_5 = arith.constant 0 : index
    %c0_6 = arith.constant 0 : index
    %c0_7 = arith.constant 0 : index
    %5 = vector.load %arg4[%c0_4, %c0_5, %c0_6, %c0_7] : memref<1x1x2x128xf32, #tpu.memory_space<vmem>>, vector<1x1x2x128xf32>
    %6 = vector.shape_cast %5 : vector<1x1x2x128xf32> to vector<2x128xf32>
    %cst = arith.constant 0.000000e+00 : f32
    %7 = vector.broadcast %cst : f32 to vector<2x128xf32>
    %8 = arith.subf %7, %4 : vector<2x128xf32>
    %cst_8 = arith.constant 0.000000e+00 : f32
    %9 = vector.broadcast %cst_8 : f32 to vector<2x128xf32>
    %10 = arith.maximumf %8, %9 : vector<2x128xf32>
    %11 = math.absf %4 : vector<2x128xf32>
    %cst_9 = arith.constant 0.000000e+00 : f32
    %12 = vector.broadcast %cst_9 : f32 to vector<2x128xf32>
    %13 = arith.subf %12, %11 : vector<2x128xf32>
    %14 = math.exp %13 : vector<2x128xf32>
    %cst_10 = arith.constant 1.000000e+00 : f32
    %15 = vector.broadcast %cst_10 : f32 to vector<2x128xf32>
    %16 = arith.addf %15, %14 : vector<2x128xf32>
    %17 = math.log %16 : vector<2x128xf32>
    %18 = arith.addf %10, %17 : vector<2x128xf32>
    %19 = arith.addf %18, %4 : vector<2x128xf32>
    %cst_11 = arith.constant 73.6827239 : f32
    %20 = vector.broadcast %cst_11 : f32 to vector<2x128xf32>
    %21 = arith.minimumf %18, %20 : vector<2x128xf32>
    %cst_12 = arith.constant 73.6827239 : f32
    %22 = vector.broadcast %cst_12 : f32 to vector<2x128xf32>
    %23 = arith.minimumf %19, %22 : vector<2x128xf32>
    %c0_13 = arith.constant 0 : index
    %c0_14 = arith.constant 0 : index
    %c0_15 = arith.constant 0 : index
    %c0_16 = arith.constant 0 : index
    %24 = vector.load %arg5[%c0_13, %c0_14, %c0_15, %c0_16] : memref<1x1x2x128xf32, #tpu.memory_space<vmem>>, vector<1x1x2x128xf32>
    %25 = vector.shape_cast %24 : vector<1x1x2x128xf32> to vector<2x128xf32>
    %26 = arith.addf %25, %23 : vector<2x128xf32>
    %c0_17 = arith.constant 0 : index
    %c0_18 = arith.constant 0 : index
    %c0_19 = arith.constant 0 : index
    %c0_20 = arith.constant 0 : index
    %27 = vector.load %arg5[%c0_17, %c0_18, %c0_19, %c0_20] : memref<1x1x2x128xf32, #tpu.memory_space<vmem>>, vector<1x1x2x128xf32>
    %28 = vector.shape_cast %27 : vector<1x1x2x128xf32> to vector<2x128xf32>
    %29 = vector.shape_cast %26 : vector<2x128xf32> to vector<1x1x2x128xf32>
    tpu.vector_store %arg5[%c0_17, %c0_18, %c0_19, %c0_20], %29 {strides = array<i32>} : memref<1x1x2x128xf32, #tpu.memory_space<vmem>>, vector<1x1x2x128xf32>,
    %30 = arith.mulf %6, %21 : vector<2x128xf32>
    %c0_21 = arith.constant 0 : index
    %c0_22 = arith.constant 0 : index
    %c0_23 = arith.constant 0 : index
    %c0_24 = arith.constant 0 : index
    %31 = vector.load %arg6[%c0_21, %c0_22, %c0_23, %c0_24] : memref<1x1x2x128xf32, #tpu.memory_space<vmem>>, vector<1x1x2x128xf32>
    %32 = vector.shape_cast %31 : vector<1x1x2x128xf32> to vector<2x128xf32>
    %33 = arith.addf %32, %30 : vector<2x128xf32>
    %c0_25 = arith.constant 0 : index
    %c0_26 = arith.constant 0 : index
    %c0_27 = arith.constant 0 : index
    %c0_28 = arith.constant 0 : index
    %34 = vector.load %arg6[%c0_25, %c0_26, %c0_27, %c0_28] : memref<1x1x2x128xf32, #tpu.memory_space<vmem>>, vector<1x1x2x128xf32>
    %35 = vector.shape_cast %34 : vector<1x1x2x128xf32> to vector<2x128xf32>
    %36 = vector.shape_cast %33 : vector<2x128xf32> to vector<1x1x2x128xf32>
    tpu.vector_store %arg6[%c0_25, %c0_26, %c0_27, %c0_28], %36 {strides = array<i32>} : memref<1x1x2x128xf32, #tpu.memory_space<vmem>>, vector<1x1x2x128xf32>,
    %37 = arith.mulf %6, %23 : vector<2x128xf32>
    %c0_29 = arith.constant 0 : index
    %c0_30 = arith.constant 0 : index
    %c0_31 = arith.constant 0 : index
    %c0_32 = arith.constant 0 : index
    %38 = vector.load %arg7[%c0_29, %c0_30, %c0_31, %c0_32] : memref<1x1x2x128xf32, #tpu.memory_space<vmem>>, vector<1x1x2x128xf32>
    %39 = vector.shape_cast %38 : vector<1x1x2x128xf32> to vector<2x128xf32>
    %40 = arith.addf %39, %37 : vector<2x128xf32>
    %c0_33 = arith.constant 0 : index
    %c0_34 = arith.constant 0 : index
    %c0_35 = arith.constant 0 : index
    %c0_36 = arith.constant 0 : index
    %41 = vector.load %arg7[%c0_33, %c0_34, %c0_35, %c0_36] : memref<1x1x2x128xf32, #tpu.memory_space<vmem>>, vector<1x1x2x128xf32>
    %42 = vector.shape_cast %41 : vector<1x1x2x128xf32> to vector<2x128xf32>
    %43 = vector.shape_cast %40 : vector<2x128xf32> to vector<1x1x2x128xf32>
    tpu.vector_store %arg7[%c0_33, %c0_34, %c0_35, %c0_36], %43 {strides = array<i32>} : memref<1x1x2x128xf32, #tpu.memory_space<vmem>>, vector<1x1x2x128xf32>,
    %c0_37 = arith.constant 0 : index
    %c0_38 = arith.constant 0 : index
    %c0_39 = arith.constant 0 : index
    %c0_40 = arith.constant 0 : index
    %44 = vector.load %arg8[%c0_37, %c0_38, %c0_39, %c0_40] : memref<1x1x2x128xf32, #tpu.memory_space<vmem>>, vector<1x1x2x128xf32>
    %45 = vector.shape_cast %44 : vector<1x1x2x128xf32> to vector<2x128xf32>
    %46 = arith.addf %45, %6 : vector<2x128xf32>
    %c0_41 = arith.constant 0 : index
    %c0_42 = arith.constant 0 : index
    %c0_43 = arith.constant 0 : index
    %c0_44 = arith.constant 0 : index
    %47 = vector.load %arg8[%c0_41, %c0_42, %c0_43, %c0_44] : memref<1x1x2x128xf32, #tpu.memory_space<vmem>>, vector<1x1x2x128xf32>
    %48 = vector.shape_cast %47 : vector<1x1x2x128xf32> to vector<2x128xf32>
    %49 = vector.shape_cast %46 : vector<2x128xf32> to vector<1x1x2x128xf32>
    tpu.vector_store %arg8[%c0_41, %c0_42, %c0_43, %c0_44], %49 {strides = array<i32>} : memref<1x1x2x128xf32, #tpu.memory_space<vmem>>, vector<1x1x2x128xf32>,
    return
  }
  func.func @transform_0(%arg0: i32, %arg1: i32, %arg2: i32) -> (i32, i32, i32, i32) {
    %c1_i32 = arith.constant 1 : i32
    %0 = arith.muli %arg1, %c1_i32 : i32
    %1 = arith.addi %0, %arg2 : i32
    %c0_i32 = arith.constant 0 : i32
    %c0_i32_0 = arith.constant 0 : i32
    %c0_i32_1 = arith.constant 0 : i32
    return %arg0, %c0_i32, %1, %c0_i32_0 : i32, i32, i32, i32
  }
  func.func @transform_1(%arg0: i32, %arg1: i32, %arg2: i32) -> (i32, i32, i32, i32) {
    %c1_i32 = arith.constant 1 : i32
    %0 = arith.muli %arg1, %c1_i32 : i32
    %1 = arith.addi %0, %arg2 : i32
    %c0_i32 = arith.constant 0 : i32
    %c0_i32_0 = arith.constant 0 : i32
    %c0_i32_1 = arith.constant 0 : i32
    return %arg0, %c0_i32, %1, %c0_i32_0 : i32, i32, i32, i32
  }
  func.func @transform_2(%arg0: i32, %arg1: i32, %arg2: i32) -> (i32, i32, i32, i32) {
    %c0_i32 = arith.constant 0 : i32
    %c0_i32_0 = arith.constant 0 : i32
    %c0_i32_1 = arith.constant 0 : i32
    return %arg0, %arg1, %c0_i32, %c0_i32_0 : i32, i32, i32, i32
  }
  func.func @transform_3(%arg0: i32, %arg1: i32, %arg2: i32) -> (i32, i32, i32, i32) {
    %c0_i32 = arith.constant 0 : i32
    %c0_i32_0 = arith.constant 0 : i32
    %c0_i32_1 = arith.constant 0 : i32
    return %arg0, %arg1, %c0_i32, %c0_i32_0 : i32, i32, i32, i32
  }
  func.func @transform_4(%arg0: i32, %arg1: i32, %arg2: i32) -> (i32, i32, i32, i32) {
    %c0_i32 = arith.constant 0 : i32
    %c0_i32_0 = arith.constant 0 : i32
    %c0_i32_1 = arith.constant 0 : i32
    return %arg0, %arg1, %c0_i32, %c0_i32_0 : i32, i32, i32, i32
  }
  func.func @transform_5(%arg0: i32, %arg1: i32, %arg2: i32) -> (i32, i32, i32, i32) {
    %c0_i32 = arith.constant 0 : i32
    %c0_i32_0 = arith.constant 0 : i32
    %c0_i32_1 = arith.constant 0 : i32
    return %arg0, %arg1, %c0_i32, %c0_i32_0 : i32, i32, i32, i32
  }
}

</mosaic_0001>

<llo_original>
// kernel: cwce_loss.1
$region0: #{cwce_loss.1}
  #allocation0 [shape = 'u32[]', space=smem, size = 0x4, offset = 0x4, fixed_abs, tag = 'smem constant byte address 0x4 - core index']
  #allocation1 [shape = 'u32[72,128]{1,0:T(1,128)}', space=vmem, size = 0x9000, scoped, tag = 'internal scratch']
  %s0 = inlined_call_operand.vmem [shape: f32[2,4,2,128], index: 0, kind: input, shape index: {}]
  %s1 = inlined_call_operand.vmem [shape: f32[2,1,2,128], index: 1, kind: input, shape index: {}]
  %s2 = inlined_call_operand.vmem [shape: f32[2,1,2,128], index: 2, kind: output, shape index: {0}]
  %s3 = inlined_call_operand.vmem [shape: f32[2,1,2,128], index: 3, kind: output, shape index: {1}]
  %s4 = inlined_call_operand.vmem [shape: f32[2,1,2,128], index: 4, kind: output, shape index: {2}]
  %s5 = inlined_call_operand.vmem [shape: f32[2,1,2,128], index: 5, kind: output, shape index: {3}]
  %6 = xla_tuple %s2, %s3, %s4, %s5
  %s7 = sld [smem:[#allocation0]]
  $region69: #{cwce_loss.1} parent=0
    _
  %s9 = ssub.s32 1, %s7
  %s10 = scalar_select 0, %s9, %s7
  loop: start=0, step=1, limit=4
  $region2: #{cwce_loss.1} parent=0 // loop_pre_header
    _
  $region3: #{cwce_loss.1} parent=0 // loop_header
    %s12 = sphi 0, %s16
    %p13 = scmp.ge.s32.totalorder %s12, 4
    %s19 = sphi 0, %s38
    %s20 = sphi 0, %s34
    %s21 = sphi 0, %s30
    %s22 = sphi 0, %s19
    %s23 = sphi 0, %s20
    %s24 = sphi 0, %s21
    %s25 = sphi 0, %s22
    %s26 = sphi 0, %s23
    %s27 = sphi 0, %s24
    %s45 = sphi 0, %s47
    %s48 = sphi 0, %s45
    %s49 = sphi 0, %s48
    %s65 = sphi 0, %s49
    %s75 = sphi 0, %s77
    %s78 = sphi 0, %s75
    %s79 = sphi 0, %s78
    %s95 = sphi 0, %s79
    %s103 = sphi 0, %s105
    %s106 = sphi 0, %s103
    %s107 = sphi 0, %s106
    %s123 = sphi 0, %s107
    %s131 = sphi 0, %s133
    %s134 = sphi 0, %s131
    %s135 = sphi 0, %s134
    %s151 = sphi 0, %s135
    %s159 = sphi 0, %s161
    %s162 = sphi 0, %s159
    %s163 = sphi 0, %s162
    %s179 = sphi 0, %s163
    %s187 = sphi 0, %s189
    %s190 = sphi 0, %s187
    %s191 = sphi 0, %s190
    %s207 = sphi 0, %s191
  $region4: #{cwce_loss.1} parent=0 // loop_header_branch
    %15 = sbr.rel (%p13) target = $region8
  $region5: #{cwce_loss.1} parent=0 // loop_body
    %s17 = ssub.s32 %s12, 1
    %s18 = ssub.s32 %s12, 2
    %s28 = sadd.s32 1, %s21
    %p29 = scmp.ge.s32.totalorder %s28, 1
    %s30 = scalar_select %p29, 0, %s28
    %s31 = sadd.s32 1, %s20
    %s32 = scalar_select %p29, %s31, %s20
    %p33 = scmp.ge.s32.totalorder %s32, 1
    %s34 = scalar_select %p33, 0, %s32
    %s35 = sadd.s32 1, %s19
    %s36 = scalar_select %p33, %s35, %s19
    %p37 = scmp.ge.s32.totalorder %s36, 2
    %s38 = scalar_select %p37, 0, %s36
    %s39 = sadd.s32 %s20, %s21
    %s40 = sadd.s32 %s34, %s30
    %s41 = ssub.s32 %s19, %s38
    %s42 = ssub.s32 %s39, %s40
    %s43 = sor.u32 %s41, %s42
    %p44 = scmp.eq.s32.totalorder %s43, 0
    %s46 = sadd.s32 %s45, 1
    %s47 = scalar_select %p44, %s45, %s46
    %p50 = pneg %p44
    %p51 = scmp.eq.s32.totalorder %s12, 1
    %p52 = por %p50, %p51
    %p53 = scmp.ne.s32.totalorder %s45, %s48
    %p54 = scmp.eq.s32.totalorder %s12, 0
    %p55 = por %p53, %p54
    %p56 = scmp.ne.s32.totalorder %s45, %s48
    %p57 = scmp.eq.s32.totalorder %s17, 1
    %p58 = por %p56, %p57
    %p59 = scmp.ne.s32.totalorder %s48, %s49
    %p60 = scmp.eq.s32.totalorder %s17, 0
    %p61 = por %p59, %p60
    %p62 = scmp.ne.s32.totalorder %s48, %s49
    %p63 = scmp.eq.s32.totalorder %s18, 1
    %p64 = por %p62, %p63
    %p66 = scmp.ne.s32.totalorder %s49, %s65
    %p67 = scmp.eq.s32.totalorder %s18, 0
    %p68 = por %p66, %p67
    %s69 = sadd.s32 %s20, %s21
    %s70 = sadd.s32 %s34, %s30
    %s71 = ssub.s32 %s19, %s38
    %s72 = ssub.s32 %s69, %s70
    %s73 = sor.u32 %s71, %s72
    %p74 = scmp.eq.s32.totalorder %s73, 0
    %s76 = sadd.s32 %s75, 1
    %s77 = scalar_select %p74, %s75, %s76
    %p80 = pneg %p74
    %p81 = scmp.eq.s32.totalorder %s12, 1
    %p82 = por %p80, %p81
    %p83 = scmp.ne.s32.totalorder %s75, %s78
    %p84 = scmp.eq.s32.totalorder %s12, 0
    %p85 = por %p83, %p84
    %p86 = scmp.ne.s32.totalorder %s75, %s78
    %p87 = scmp.eq.s32.totalorder %s17, 1
    %p88 = por %p86, %p87
    %p89 = scmp.ne.s32.totalorder %s78, %s79
    %p90 = scmp.eq.s32.totalorder %s17, 0
    %p91 = por %p89, %p90
    %p92 = scmp.ne.s32.totalorder %s78, %s79
    %p93 = scmp.eq.s32.totalorder %s18, 1
    %p94 = por %p92, %p93
    %p96 = scmp.ne.s32.totalorder %s79, %s95
    %p97 = scmp.eq.s32.totalorder %s18, 0
    %p98 = por %p96, %p97
    %s99 = ssub.s32 %s19, %s38
    %s100 = ssub.s32 %s20, %s34
    %s101 = sor.u32 %s99, %s100
    %p102 = scmp.eq.s32.totalorder %s101, 0
    %s104 = sadd.s32 %s103, 1
    %s105 = scalar_select %p102, %s103, %s104
    %p108 = pneg %p102
    %p109 = scmp.eq.s32.totalorder %s12, 1
    %p110 = por %p108, %p109
    %p111 = scmp.ne.s32.totalorder %s103, %s106
    %p112 = scmp.eq.s32.totalorder %s12, 0
    %p113 = por %p111, %p112
    %p114 = scmp.ne.s32.totalorder %s103, %s106
    %p115 = scmp.eq.s32.totalorder %s17, 1
    %p116 = por %p114, %p115
    %p117 = scmp.ne.s32.totalorder %s106, %s107
    %p118 = scmp.eq.s32.totalorder %s17, 0
    %p119 = por %p117, %p118
    %p120 = scmp.ne.s32.totalorder %s106, %s107
    %p121 = scmp.eq.s32.totalorder %s18, 1
    %p122 = por %p120, %p121
    %p124 = scmp.ne.s32.totalorder %s107, %s123
    %p125 = scmp.eq.s32.totalorder %s18, 0
    %p126 = por %p124, %p125
    %s127 = ssub.s32 %s19, %s38
    %s128 = ssub.s32 %s20, %s34
    %s129 = sor.u32 %s127, %s128
    %p130 = scmp.eq.s32.totalorder %s129, 0
    %s132 = sadd.s32 %s131, 1
    %s133 = scalar_select %p130, %s131, %s132
    %p136 = pneg %p130
    %p137 = scmp.eq.s32.totalorder %s12, 1
    %p138 = por %p136, %p137
    %p139 = scmp.ne.s32.totalorder %s131, %s134
    %p140 = scmp.eq.s32.totalorder %s12, 0
    %p141 = por %p139, %p140
    %p142 = scmp.ne.s32.totalorder %s131, %s134
    %p143 = scmp.eq.s32.totalorder %s17, 1
    %p144 = por %p142, %p143
    %p145 = scmp.ne.s32.totalorder %s134, %s135
    %p146 = scmp.eq.s32.totalorder %s17, 0
    %p147 = por %p145, %p146
    %p148 = scmp.ne.s32.totalorder %s134, %s135
    %p149 = scmp.eq.s32.totalorder %s18, 1
    %p150 = por %p148, %p149
    %p152 = scmp.ne.s32.totalorder %s135, %s151
    %p153 = scmp.eq.s32.totalorder %s18, 0
    %p154 = por %p152, %p153
    %s155 = ssub.s32 %s19, %s38
    %s156 = ssub.s32 %s20, %s34
    %s157 = sor.u32 %s155, %s156
    %p158 = scmp.eq.s32.totalorder %s157, 0
    %s160 = sadd.s32 %s159, 1
    %s161 = scalar_select %p158, %s159, %s160
    %p164 = pneg %p158
    %p165 = scmp.eq.s32.totalorder %s12, 1
    %p166 = por %p164, %p165
    %p167 = scmp.ne.s32.totalorder %s159, %s162
    %p168 = scmp.eq.s32.totalorder %s12, 0
    %p169 = por %p167, %p168
    %p170 = scmp.ne.s32.totalorder %s159, %s162
    %p171 = scmp.eq.s32.totalorder %s17, 1
    %p172 = por %p170, %p171
    %p173 = scmp.ne.s32.totalorder %s162, %s163
    %p174 = scmp.eq.s32.totalorder %s17, 0
    %p175 = por %p173, %p174
    %p176 = scmp.ne.s32.totalorder %s162, %s163
    %p177 = scmp.eq.s32.totalorder %s18, 1
    %p178 = por %p176, %p177
    %p180 = scmp.ne.s32.totalorder %s163, %s179
    %p181 = scmp.eq.s32.totalorder %s18, 0
    %p182 = por %p180, %p181
    %s183 = ssub.s32 %s19, %s38
    %s184 = ssub.s32 %s20, %s34
    %s185 = sor.u32 %s183, %s184
    %p186 = scmp.eq.s32.totalorder %s185, 0
    %s188 = sadd.s32 %s187, 1
    %s189 = scalar_select %p186, %s187, %s188
    %p192 = pneg %p186
    %p193 = scmp.eq.s32.totalorder %s12, 1
    %p194 = por %p192, %p193
    %p195 = scmp.ne.s32.totalorder %s187, %s190
    %p196 = scmp.eq.s32.totalorder %s12, 0
    %p197 = por %p195, %p196
    %p198 = scmp.ne.s32.totalorder %s187, %s190
    %p199 = scmp.eq.s32.totalorder %s17, 1
    %p200 = por %p198, %p199
    %p201 = scmp.ne.s32.totalorder %s190, %s191
    %p202 = scmp.eq.s32.totalorder %s17, 0
    %p203 = por %p201, %p202
    %p204 = scmp.ne.s32.totalorder %s190, %s191
    %p205 = scmp.eq.s32.totalorder %s18, 1
    %p206 = por %p204, %p205
    %p208 = scmp.ne.s32.totalorder %s191, %s207
    %p209 = scmp.eq.s32.totalorder %s18, 0
    %p210 = por %p208, %p209
    %p211 = scmp.le.s32.totalorder 1, %s12
    %p212 = scmp.lt.s32.totalorder %s12, 3
    %p213 = pnand %p211, %p212
    %p214 = pneg %p213
    // Predicated region
    $region9: #{cwce_loss.1} parent=5 // pred_check
      _
    $region10: #{cwce_loss.1} parent=5 // pred_check_branch
      %216 = sbr.rel (%p213) target = $region12
    $region11: #{cwce_loss.1} parent=5 // pred_region
      %s217 = ssub.s32 %s12, 1
    $region12: #{cwce_loss.1} parent=5 // pred_fallthru
      _
    %p218 = scmp.lt.s32.totalorder %s12, 2
    // Predicated region
    $region13: #{cwce_loss.1} parent=5 // pred_check
      %p219 = pneg %p218
    $region14: #{cwce_loss.1} parent=5 // pred_check_branch
      %221 = sbr.rel (%p219) target = $region16
    $region15: #{cwce_loss.1} parent=5 // pred_region
      // Predicated region
      $region17: #{cwce_loss.1} parent=15 // pred_check
        %p222 = pneg %p55
      $region18: #{cwce_loss.1} parent=15 // pred_check_branch
        %224 = sbr.rel (%p222) target = $region20
      $region19: #{cwce_loss.1} parent=15 // pred_region
        %s225 = sadd.s32 %s20, %s21
        %p226 = scmp.lt.s32.totalorder %s19, 1
        %s227 = scalar_select %p226, %s19, 1
        %p228 = scmp.lt.s32.totalorder %s225, 0
        %s229 = scalar_select %p228, %s225, 0
        %s230 = smul.addr %s227, 4
        %s231 = sadd.s32 %s229, %s230
        %s232 = smul.addr %s231, 2
        %s233 = scalar_lea.vmem %s0, %s232
        %s234 = sadd.s32 %s20, %s21
      $region20: #{cwce_loss.1} parent=15 // pred_fallthru
        _
      // Predicated region
      $region21: #{cwce_loss.1} parent=15 // pred_check
        %p235 = pneg %p85
      $region22: #{cwce_loss.1} parent=15 // pred_check_branch
        %237 = sbr.rel (%p235) target = $region24
      $region23: #{cwce_loss.1} parent=15 // pred_region
        %s238 = sadd.s32 %s20, %s21
        %p239 = scmp.lt.s32.totalorder %s19, 1
        %s240 = scalar_select %p239, %s19, 1
        %p241 = scmp.lt.s32.totalorder %s238, 0
        %s242 = scalar_select %p241, %s238, 0
        %s243 = sadd.s32 %s242, %s240
        %s244 = smul.addr %s243, 2
        %s245 = scalar_lea.vmem %s1, %s244
        %s246 = sadd.s32 %s20, %s21
      $region24: #{cwce_loss.1} parent=15 // pred_fallthru
        _
    $region16: #{cwce_loss.1} parent=5 // pred_fallthru
      _
    %p247 = scmp.le.s32.totalorder 1, %s12
    %p248 = scmp.lt.s32.totalorder %s12, 3
    %p249 = pnand %p247, %p248
    %p250 = pneg %p249
    // Predicated region
    $region25: #{cwce_loss.1} parent=5 // pred_check
      _
    $region26: #{cwce_loss.1} parent=5 // pred_check_branch
      %252 = sbr.rel (%p249) target = $region28
    $region27: #{cwce_loss.1} parent=5 // pred_region
      %s253 = ssub.s32 %s12, 1
      %s254 = sadd.s32 %s23, %s24
      %p255 = scmp.lt.s32.totalorder %s22, 1
      %s256 = scalar_select %p255, %s22, 1
      %p257 = scmp.lt.s32.totalorder %s254, 0
      %s258 = scalar_select %p257, %s254, 0
      %s259 = smul.addr %s256, 4
      %s260 = sadd.s32 %s258, %s259
      %s261 = smul.addr %s260, 2
      %s262 = scalar_lea.vmem %s0, %s261
      %p263 = pneg %p61
      %p264 = pneg %p58
      %s265 = sadd.s32 %s23, %s24
      %p266 = scmp.lt.s32.totalorder %s22, 1
      %s267 = scalar_select %p266, %s22, 1
      %p268 = scmp.lt.s32.totalorder %s265, 0
      %s269 = scalar_select %p268, %s265, 0
      %s270 = sadd.s32 %s269, %s267
      %s271 = smul.addr %s270, 2
      %s272 = scalar_lea.vmem %s1, %s271
      %p273 = pneg %p91
      %p274 = pneg %p88
      %p275 = pneg %p119
      %p276 = pneg %p116
      %p277 = scmp.lt.s32.totalorder %s22, 1
      %s278 = scalar_select %p277, %s22, 1
      %p279 = scmp.lt.s32.totalorder %s23, 0
      %s280 = scalar_select %p279, %s23, 0
      %s281 = sadd.s32 %s280, %s278
      %s282 = smul.addr %s281, 2
      %s283 = scalar_lea.vmem %s2, %s282
      %p284 = pneg %p147
      %p285 = pneg %p144
      %p286 = scmp.lt.s32.totalorder %s22, 1
      %s287 = scalar_select %p286, %s22, 1
      %p288 = scmp.lt.s32.totalorder %s23, 0
      %s289 = scalar_select %p288, %s23, 0
      %s290 = sadd.s32 %s289, %s287
      %s291 = smul.addr %s290, 2
      %s292 = scalar_lea.vmem %s3, %s291
      %p293 = pneg %p175
      %p294 = pneg %p172
      %p295 = scmp.lt.s32.totalorder %s22, 1
      %s296 = scalar_select %p295, %s22, 1
      %p297 = scmp.lt.s32.totalorder %s23, 0
      %s298 = scalar_select %p297, %s23, 0
      %s299 = sadd.s32 %s298, %s296
      %s300 = smul.addr %s299, 2
      %s301 = scalar_lea.vmem %s4, %s300
      %p302 = pneg %p203
      %p303 = pneg %p200
      %p304 = scmp.lt.s32.totalorder %s22, 1
      %s305 = scalar_select %p304, %s22, 1
      %p306 = scmp.lt.s32.totalorder %s23, 0
      %s307 = scalar_select %p306, %s23, 0
      %s308 = sadd.s32 %s307, %s305
      %s309 = smul.addr %s308, 2
      %s310 = scalar_lea.vmem %s5, %s309
      %s311 = sadd.s32 %s23, %s24
      %p312 = scmp.lt.s32.totalorder %s22, 1
      %s313 = scalar_select %p312, %s22, 1
      %p314 = scmp.lt.s32.totalorder %s311, 0
      %s315 = scalar_select %p314, %s311, 0
      %s316 = smul.addr %s313, 4
      %s317 = sadd.s32 %s315, %s316
      %s318 = smul.addr %s317, 2
      %s319 = scalar_lea.vmem %s0, %s318
      %s320 = sadd.s32 %s23, %s24
      %s321 = sadd.s32 %s23, %s24
      %p322 = scmp.lt.s32.totalorder %s22, 1
      %s323 = scalar_select %p322, %s22, 1
      %p324 = scmp.lt.s32.totalorder %s321, 0
      %s325 = scalar_select %p324, %s321, 0
      %s326 = sadd.s32 %s325, %s323
      %s327 = smul.addr %s326, 2
      %s328 = scalar_lea.vmem %s1, %s327
      %s329 = sadd.s32 %s23, %s24
      %p330 = scmp.lt.s32.totalorder %s22, 1
      %s331 = scalar_select %p330, %s22, 1
      %p332 = scmp.lt.s32.totalorder %s23, 0
      %s333 = scalar_select %p332, %s23, 0
      %s334 = sadd.s32 %s333, %s331
      %s335 = smul.addr %s334, 2
      %s336 = scalar_lea.vmem %s2, %s335
      %p337 = scmp.lt.s32.totalorder %s22, 1
      %s338 = scalar_select %p337, %s22, 1
      %p339 = scmp.lt.s32.totalorder %s23, 0
      %s340 = scalar_select %p339, %s23, 0
      %s341 = sadd.s32 %s340, %s338
      %s342 = smul.addr %s341, 2
      %s343 = scalar_lea.vmem %s3, %s342
      %p344 = scmp.lt.s32.totalorder %s22, 1
      %s345 = scalar_select %p344, %s22, 1
      %p346 = scmp.lt.s32.totalorder %s23, 0
      %s347 = scalar_select %p346, %s23, 0
      %s348 = sadd.s32 %s347, %s345
      %s349 = smul.addr %s348, 2
      %s350 = scalar_lea.vmem %s4, %s349
      %p351 = scmp.lt.s32.totalorder %s22, 1
      %s352 = scalar_select %p351, %s22, 1
      %p353 = scmp.lt.s32.totalorder %s23, 0
      %s354 = scalar_select %p353, %s23, 0
      %s355 = sadd.s32 %s354, %s352
      %s356 = smul.addr %s355, 2
      %s357 = scalar_lea.vmem %s5, %s356
      %p358 = scmp.eq.s32.totalorder %s24, 0
      // Predicated region
      $region29: #{cwce_loss.1} parent=27 // pred_check
        %p359 = pneg %p358
      $region30: #{cwce_loss.1} parent=27 // pred_check_branch
        %361 = sbr.rel (%p359) target = $region32
      $region31: #{cwce_loss.1} parent=27 // pred_region
        %362 = vst [vmem:[%s336] sm:$0x3] 0.0
        %363 = vst [vmem:[%s343] sm:$0x3] 0.0
        %364 = vst [vmem:[%s350] sm:$0x3] 0.0
        %365 = vst [vmem:[%s357] sm:$0x3] 0.0
      $region32: #{cwce_loss.1} parent=27 // pred_fallthru
        _
      %v366 = vld [vmem:[%s319] sm:$0x3]
      %v367 = vld [vmem:[%s328] sm:$0x3]
      %v368 = vsub.f32 0.0, %v366
      %v369 = vmax.f32 %v368, 0.0
      %v370 = vand.u32 2147483647, %v366
      %v371 = vsub.f32 0.0, %v370
      %v372 = vmul.f32 %v371, 1.442695
      %v373 = vpow.pop %v372
      %v374 = vadd.f32 %v373, 1.0
      %v375 = vlog2.pop %v374
      %v376 = vmul.f32 %v375, 0.6931472
      %v377 = vadd.f32 %v369, %v376
      %v378 = vadd.f32 %v377, %v366
      %v379 = vmin.f32 %v377, 73.682724
      %v380 = vmin.f32 %v378, 73.682724
      %v381 = vld [vmem:[%s336] sm:$0x3]
      %v382 = vadd.f32 %v381, %v380
      %383 = vst [vmem:[%s336] sm:$0x3] %v382
      %v384 = vmul.f32 %v367, %v379
      %v385 = vld [vmem:[%s343] sm:$0x3]
      %v386 = vadd.f32 %v385, %v384
      %387 = vst [vmem:[%s343] sm:$0x3] %v386
      %v388 = vmul.f32 %v367, %v380
      %v389 = vld [vmem:[%s350] sm:$0x3]
      %v390 = vadd.f32 %v389, %v388
      %391 = vst [vmem:[%s350] sm:$0x3] %v390
      %v392 = vld [vmem:[%s357] sm:$0x3]
      %v393 = vadd.f32 %v392, %v367
      %394 = vst [vmem:[%s357] sm:$0x3] %v393
      %p395 = scmp.lt.s32.totalorder %s22, 1
      %s396 = scalar_select %p395, %s22, 1
      %p397 = scmp.lt.s32.totalorder %s23, 0
      %s398 = scalar_select %p397, %s23, 0
      %s399 = sadd.s32 %s398, %s396
      %s400 = smul.addr %s399, 2
      %s401 = scalar_lea.vmem %s2, %s400
      %p402 = scmp.lt.s32.totalorder %s22, 1
      %s403 = scalar_select %p402, %s22, 1
      %p404 = scmp.lt.s32.totalorder %s23, 0
      %s405 = scalar_select %p404, %s23, 0
      %s406 = sadd.s32 %s405, %s403
      %s407 = smul.addr %s406, 2
      %s408 = scalar_lea.vmem %s3, %s407
      %p409 = scmp.lt.s32.totalorder %s22, 1
      %s410 = scalar_select %p409, %s22, 1
      %p411 = scmp.lt.s32.totalorder %s23, 0
      %s412 = scalar_select %p411, %s23, 0
      %s413 = sadd.s32 %s412, %s410
      %s414 = smul.addr %s413, 2
      %s415 = scalar_lea.vmem %s4, %s414
      %p416 = scmp.lt.s32.totalorder %s22, 1
      %s417 = scalar_select %p416, %s22, 1
      %p418 = scmp.lt.s32.totalorder %s23, 0
      %s419 = scalar_select %p418, %s23, 0
      %s420 = sadd.s32 %s419, %s417
      %s421 = smul.addr %s420, 2
      %s422 = scalar_lea.vmem %s5, %s421
      // Predicated region
      $region33: #{cwce_loss.1} parent=27 // pred_check
        %p423 = pneg %p116
      $region34: #{cwce_loss.1} parent=27 // pred_check_branch
        %425 = sbr.rel (%p423) target = $region36
      $region35: #{cwce_loss.1} parent=27 // pred_region
        _
      $region36: #{cwce_loss.1} parent=27 // pred_fallthru
        _
      // Predicated region
      $region37: #{cwce_loss.1} parent=27 // pred_check
        %p426 = pneg %p144
      $region38: #{cwce_loss.1} parent=27 // pred_check_branch
        %428 = sbr.rel (%p426) target = $region40
      $region39: #{cwce_loss.1} parent=27 // pred_region
        _
      $region40: #{cwce_loss.1} parent=27 // pred_fallthru
        _
      // Predicated region
      $region41: #{cwce_loss.1} parent=27 // pred_check
        %p429 = pneg %p172
      $region42: #{cwce_loss.1} parent=27 // pred_check_branch
        %431 = sbr.rel (%p429) target = $region44
      $region43: #{cwce_loss.1} parent=27 // pred_region
        _
      $region44: #{cwce_loss.1} parent=27 // pred_fallthru
        _
      // Predicated region
      $region45: #{cwce_loss.1} parent=27 // pred_check
        %p432 = pneg %p200
      $region46: #{cwce_loss.1} parent=27 // pred_check_branch
        %434 = sbr.rel (%p432) target = $region48
      $region47: #{cwce_loss.1} parent=27 // pred_region
        _
      $region48: #{cwce_loss.1} parent=27 // pred_fallthru
        _
    $region28: #{cwce_loss.1} parent=5 // pred_fallthru
      _
    %p435 = scmp.le.s32.totalorder 2, %s12
    // Predicated region
    $region49: #{cwce_loss.1} parent=5 // pred_check
      %p436 = pneg %p435
    $region50: #{cwce_loss.1} parent=5 // pred_check_branch
      %438 = sbr.rel (%p436) target = $region52
    $region51: #{cwce_loss.1} parent=5 // pred_region
      %s439 = ssub.s32 %s12, 2
      // Predicated region
      $region53: #{cwce_loss.1} parent=51 // pred_check
        %p440 = pneg %p122
      $region54: #{cwce_loss.1} parent=51 // pred_check_branch
        %442 = sbr.rel (%p440) target = $region56
      $region55: #{cwce_loss.1} parent=51 // pred_region
        %p443 = scmp.lt.s32.totalorder %s25, 1
        %s444 = scalar_select %p443, %s25, 1
        %p445 = scmp.lt.s32.totalorder %s26, 0
        %s446 = scalar_select %p445, %s26, 0
        %s447 = sadd.s32 %s446, %s444
        %s448 = smul.addr %s447, 2
        %s449 = scalar_lea.vmem %s2, %s448
      $region56: #{cwce_loss.1} parent=51 // pred_fallthru
        _
      // Predicated region
      $region57: #{cwce_loss.1} parent=51 // pred_check
        %p450 = pneg %p150
      $region58: #{cwce_loss.1} parent=51 // pred_check_branch
        %452 = sbr.rel (%p450) target = $region60
      $region59: #{cwce_loss.1} parent=51 // pred_region
        %p453 = scmp.lt.s32.totalorder %s25, 1
        %s454 = scalar_select %p453, %s25, 1
        %p455 = scmp.lt.s32.totalorder %s26, 0
        %s456 = scalar_select %p455, %s26, 0
        %s457 = sadd.s32 %s456, %s454
        %s458 = smul.addr %s457, 2
        %s459 = scalar_lea.vmem %s3, %s458
      $region60: #{cwce_loss.1} parent=51 // pred_fallthru
        _
      // Predicated region
      $region61: #{cwce_loss.1} parent=51 // pred_check
        %p460 = pneg %p178
      $region62: #{cwce_loss.1} parent=51 // pred_check_branch
        %462 = sbr.rel (%p460) target = $region64
      $region63: #{cwce_loss.1} parent=51 // pred_region
        %p463 = scmp.lt.s32.totalorder %s25, 1
        %s464 = scalar_select %p463, %s25, 1
        %p465 = scmp.lt.s32.totalorder %s26, 0
        %s466 = scalar_select %p465, %s26, 0
        %s467 = sadd.s32 %s466, %s464
        %s468 = smul.addr %s467, 2
        %s469 = scalar_lea.vmem %s4, %s468
      $region64: #{cwce_loss.1} parent=51 // pred_fallthru
        _
      // Predicated region
      $region65: #{cwce_loss.1} parent=51 // pred_check
        %p470 = pneg %p206
      $region66: #{cwce_loss.1} parent=51 // pred_check_branch
        %472 = sbr.rel (%p470) target = $region68
      $region67: #{cwce_loss.1} parent=51 // pred_region
        %p473 = scmp.lt.s32.totalorder %s25, 1
        %s474 = scalar_select %p473, %s25, 1
        %p475 = scmp.lt.s32.totalorder %s26, 0
        %s476 = scalar_select %p475, %s26, 0
        %s477 = sadd.s32 %s476, %s474
        %s478 = smul.addr %s477, 2
        %s479 = scalar_lea.vmem %s5, %s478
      $region68: #{cwce_loss.1} parent=51 // pred_fallthru
        _
    $region52: #{cwce_loss.1} parent=5 // pred_fallthru
      _
  $region6: #{cwce_loss.1} parent=0 // loop_footer
    %s16 = sadd.s32 1, %s12
  $region7: #{cwce_loss.1} parent=0 // loop_footer_branch
    %11 = sbr.rel target = $region3
  $region8: #{cwce_loss.1} parent=0 // loop_exit
    _

</llo_original>
